<compile_context>
chip_gen: v7x
topology: tpu7x:2x2x1
jax: 0.10.0
libtpu: 0.0.40
codegen_flags: <defaults>
</compile_context>

<pallas_src>
import jax
import jax.numpy as jnp
from jax.experimental import pallas as pl
from jax.experimental.pallas import tpu as pltpu


def _round_up(x, m):
    return (x + m - 1) // m * m


def attention_kernel(x_ref, a_ref, o_ref):
    # x_ref: (TB, S, H)   a_ref: (1, H)   o_ref: (TB, H)
    x = x_ref[...]
    a = a_ref[...]

    # scores[b, s] = sum_h x[b, s, h] * a[h]   (VPU multiply + lane reduce; an
    # N=1 MXU matmul would waste the array and the kernel is HBM-bound anyway).
    scores = jnp.sum(x * a[None, :, :], axis=-1)           # (TB, S)

    # softmax over the sequence axis (PyTorch F.softmax implicit dim=1 on 2-D),
    # max-stabilized.  Exact divide: it is fully hidden under the HBM stream and
    # keeps the result within the 1e-5 reference tolerance.
    m = jnp.max(scores, axis=-1, keepdims=True)             # (TB, 1)
    e = jnp.exp(scores - m)                                  # (TB, S)
    denom = jnp.sum(e, axis=-1, keepdims=True)               # (TB, 1)
    w = e / denom                                            # (TB, S)

    # condensed_x[b, h] = sum_s w[b, s] * x[b, s, h]
    o_ref[...] = jnp.sum(x * w[:, :, None], axis=1).astype(o_ref.dtype)


def _vmem_capacity_bytes():
    try:
        return int(pltpu.get_tpu_info().vmem_capacity_bytes)
    except Exception:
        return 64 * 1024 * 1024  # conservative fallback (v7x per-TC VMEM)


def _choose_batch_tile(B, S, H, tile_budget_bytes):
    # VMEM footprint of one (tb, S, H) f32 tile including layout padding
    # (last dim lane-pads to 128, second-last sublane-pads to 8, regardless of
    # the unpadded HBM layout).
    row_bytes = _round_up(S, 8) * _round_up(max(H, 1), 128) * 4
    tb_max = max(8, (tile_budget_bytes // row_bytes) // 8 * 8)

    if B <= tb_max and B < 16:
        return B                                  # single full-extent tile
    if B <= tb_max:
        # Two tiles so both v7x TensorCores get work on the parallel grid axis.
        return min(tb_max, _round_up(-(-B // 2), 8))
    # B spans several tiles: prefer an even step count for the 2-TC megacore,
    # but never shrink below half of tb_max just to get one.
    tb = tb_max
    while tb >= max(8, tb_max // 2):
        if (-(-B // tb)) % 2 == 0:
            return tb
        tb -= 8
    return tb_max


def attention_forward(x_in, attention):
    """x_in: (B, S, H) f32, attention: (H, 1) f32 -> (B, H) f32."""
    B, S, H = x_in.shape
    assert attention.shape == (H, 1)

    # Param as a lane-major (1, H) row; no padding of x or the output.
    a_row = attention.reshape(1, H).astype(x_in.dtype)

    vmem_cap = _vmem_capacity_bytes()
    vmem_limit = min(vmem_cap // 2, 64 * 1024 * 1024)
    # Working set ~= 2 double-buffered input tiles + 2 full-tile elementwise
    # temporaries (x*a, x*w); keep it within ~3/4 of the limit for Mosaic
    # internal-scratch headroom.
    tile_budget = (vmem_limit * 3 // 4) // 4

    tb = _choose_batch_tile(B, S, H, tile_budget)
    grid = (pl.cdiv(B, tb),)

    # TODO(synk): if a single (8, S, H) tile ever exceeds VMEM (very large S*H),
    # add a second grid axis over S with an online-softmax accumulator.

    out = pl.pallas_call(
        attention_kernel,
        out_shape=jax.ShapeDtypeStruct((B, H), x_in.dtype),
        grid_spec=pltpu.PrefetchScalarGridSpec(
            num_scalar_prefetch=0,
            grid=grid,
            in_specs=[
                pl.BlockSpec((tb, S, H), lambda b: (b, 0, 0)),
                pl.BlockSpec((1, H), lambda b: (0, 0)),
            ],
            out_specs=pl.BlockSpec((tb, H), lambda b: (b, 0)),
        ),
        compiler_params=pltpu.CompilerParams(
            dimension_semantics=("parallel",),
            vmem_limit_bytes=vmem_limit,
        ),
    )(x_in, a_row)

    return out


def xavier_normal(key, shape):
    # torch.nn.init.xavier_normal_ for a 2-D (attention_size, 1) tensor:
    # fan_out = shape[0], fan_in = shape[1]; std = sqrt(2 / (fan_in + fan_out)).
    fan_out, fan_in = shape[0], shape[1]
    std = (2.0 / (fan_in + fan_out)) ** 0.5
    return std * jax.random.normal(key, shape, dtype=jnp.float32)


if __name__ == "__main__":
    B, S, H = 2, 8, 32
    key = jax.random.PRNGKey(0)
    kx, ka = jax.random.split(key)

    x_in = jax.random.normal(kx, (B, S, H), dtype=jnp.float32)
    attention = xavier_normal(ka, (H, 1))

    out = attention_forward(x_in, attention)
    out = jax.block_until_ready(out)

    # Pure-JAX reference (same math; HIGHEST precision so the matmul is full-f32
    # like the kernel's VPU reduction).
    scores_ref = jnp.squeeze(
        jnp.matmul(x_in, attention, precision=jax.lax.Precision.HIGHEST), axis=-1)
    w_ref = jax.nn.softmax(scores_ref, axis=1)[..., None]          # (B, S, 1)
    ref = jnp.sum(x_in * w_ref, axis=1)                            # (B, H)

    assert out.shape == (B, H)
    assert jnp.allclose(out, ref, atol=1e-5, rtol=1e-5)

    print("KERNEL_OK")
</pallas_src>

<mosaic_0001>
module attributes {stable_mosaic.version = 11 : i64} {
  func.func @attention_kernel(%arg0: i32, %arg1: memref<2x8x32xf32, #tpu.memory_space<vmem>>, %arg2: memref<1x32xf32, #tpu.memory_space<vmem>>, %arg3: memref<2x32xf32, #tpu.memory_space<vmem>>) attributes {dimension_semantics = [#tpu.dimension_semantics<parallel>], iteration_bounds = array<i64: 1>, scalar_prefetch = 0 : i64, scratch_operands = 0 : i64, tpu.core_type = #tpu.core_type<tc>, window_params = [{transform_indices = @transform_0, window_bounds = array<i64: 2, 8, 32>}, {pipeline_mode = #tpu.pipeline_mode<synchronous>, transform_indices = @transform_1, window_bounds = array<i64: 1, 32>}, {transform_indices = @transform_2, window_bounds = array<i64: 2, 32>}]} {
    %c0 = arith.constant 0 : index
    %c0_0 = arith.constant 0 : index
    %c0_1 = arith.constant 0 : index
    %0 = vector.load %arg1[%c0, %c0_0, %c0_1] : memref<2x8x32xf32, #tpu.memory_space<vmem>>, vector<2x8x32xf32>
    %c0_2 = arith.constant 0 : index
    %c0_3 = arith.constant 0 : index
    %1 = vector.load %arg2[%c0_2, %c0_3] : memref<1x32xf32, #tpu.memory_space<vmem>>, vector<1x32xf32>
    %2 = vector.shape_cast %1 : vector<1x32xf32> to vector<1x1x32xf32>
    %3 = vector.broadcast %2 : vector<1x1x32xf32> to vector<2x8x32xf32>
    %4 = arith.mulf %0, %3 : vector<2x8x32xf32>
    %cst = arith.constant dense<0.000000e+00> : vector<2x8xf32>
    %5 = vector.multi_reduction <add>, %4, %cst [2] : vector<2x8x32xf32> to vector<2x8xf32>
    %cst_4 = arith.constant dense<0xFF800000> : vector<2xf32>
    %6 = vector.multi_reduction <maximumf>, %5, %cst_4 [1] : vector<2x8xf32> to vector<2xf32>
    %7 = vector.shape_cast %6 : vector<2xf32> to vector<2x1xf32>
    %8 = vector.broadcast %7 : vector<2x1xf32> to vector<2x8xf32>
    %9 = arith.subf %5, %8 : vector<2x8xf32>
    %10 = math.exp %9 : vector<2x8xf32>
    %cst_5 = arith.constant dense<0.000000e+00> : vector<2xf32>
    %11 = vector.multi_reduction <add>, %10, %cst_5 [1] : vector<2x8xf32> to vector<2xf32>
    %12 = vector.shape_cast %11 : vector<2xf32> to vector<2x1xf32>
    %13 = vector.broadcast %12 : vector<2x1xf32> to vector<2x8xf32>
    %14 = arith.divf %10, %13 : vector<2x8xf32>
    %15 = vector.shape_cast %14 : vector<2x8xf32> to vector<2x8x1xf32>
    %16 = vector.broadcast %15 : vector<2x8x1xf32> to vector<2x8x32xf32>
    %17 = arith.mulf %0, %16 : vector<2x8x32xf32>
    %cst_6 = arith.constant dense<0.000000e+00> : vector<2x32xf32>
    %18 = vector.multi_reduction <add>, %17, %cst_6 [1] : vector<2x8x32xf32> to vector<2x32xf32>
    %c0_7 = arith.constant 0 : index
    %c0_8 = arith.constant 0 : index
    %19 = vector.load %arg3[%c0_7, %c0_8] : memref<2x32xf32, #tpu.memory_space<vmem>>, vector<2x32xf32>
    tpu.vector_store %arg3[%c0_7, %c0_8], %18 {strides = array<i32>} : memref<2x32xf32, #tpu.memory_space<vmem>>, vector<2x32xf32>,
    return
  }
  func.func @transform_0(%arg0: i32) -> (i32, i32, i32) {
    %c0_i32 = arith.constant 0 : i32
    %c0_i32_0 = arith.constant 0 : i32
    %c0_i32_1 = arith.constant 0 : i32
    return %arg0, %c0_i32, %c0_i32_0 : i32, i32, i32
  }
  func.func @transform_1(%arg0: i32) -> (i32, i32) {
    %c0_i32 = arith.constant 0 : i32
    %c0_i32_0 = arith.constant 0 : i32
    %c0_i32_1 = arith.constant 0 : i32
    return %c0_i32, %c0_i32_0 : i32, i32
  }
  func.func @transform_2(%arg0: i32) -> (i32, i32) {
    %c0_i32 = arith.constant 0 : i32
    %c0_i32_0 = arith.constant 0 : i32
    return %arg0, %c0_i32 : i32, i32
  }
}

</mosaic_0001>

<llo_original>
// kernel: tpu_custom_call.1
$region0: #{tpu_custom_call.1}
  #allocation0 [shape = 'u32[]', space=smem, size = 0x4, offset = 0x4, fixed_abs, tag = 'smem constant byte address 0x4 - core index']
  #allocation1 [shape = 'u32[144,128]{1,0:T(1,128)}', space=vmem, size = 0x12000, scoped, tag = 'internal scratch']
  %s0 = inlined_call_operand.hbm [shape: f32[2,8,32], index: 0, kind: input, shape index: {}]
  %s1 = inlined_call_operand.vmem [shape: f32[1,32], index: 1, kind: input, shape index: {}]
  %s2 = inlined_call_operand.hbm [shape: f32[2,32], index: 2, kind: output, shape index: {}]
  %s3 = sld [smem:[#allocation0]]
  $region22: #{tpu_custom_call.1} parent=0
    _
  %s5 = ssub.s32 1, %s3
  %s6 = scalar_select 0, %s5, %s3
  $region1: #{tpu_custom_call.1} parent=0
    #allocation2 [shape = 'u8[8192]{0}', space=vmem, size = 0x2000, scoped, tag = 'input window, operand 0, single buffered']
    #allocation3 [shape = 's32[1]{0}', space=sflag, size = 0x4, scoped, tag = 'scoped memory for tpu_custom_call.1']
    #allocation4 [shape = 's32[1]{0}', space=sflag, size = 0x4, scoped, tag = 'scoped memory for tpu_custom_call.1']
    #allocation5 [shape = 'u8[1024]{0}', space=vmem, size = 0x400, scoped, tag = 'output window, operand 0, single buffered']
    %7 = vsyncpa [#allocation3], 0
    %8 = vsyncpa [#allocation4], 0
    // Predicated region
    $region2: #{tpu_custom_call.1} parent=1 // pred_check
      _
    $region3: #{tpu_custom_call.1} parent=1 // pred_check_branch
      %10 = sbr.rel (0) target = $region5
    $region4: #{tpu_custom_call.1} parent=1 // pred_region
      %s12 = ssub.s32 256, 256
      %13 = vsyncadd [#allocation3], %s12
      %s14 = sshll.u32 [#allocation2], 4
      %s15 = int_to_ptr.vmem [resolvable:$true] %s14
      %20 = dma.hbm_to_vmem [thread:$0]  %s0, 256, %s15, [#allocation3], 128, 128, 8
    $region5: #{tpu_custom_call.1} parent=1 // pred_fallthru
      _
    // Predicated region
    $region6: #{tpu_custom_call.1} parent=1 // pred_check
      _
    $region7: #{tpu_custom_call.1} parent=1 // pred_check_branch
      %22 = sbr.rel (0) target = $region9
    $region8: #{tpu_custom_call.1} parent=1 // pred_region
      _
    $region9: #{tpu_custom_call.1} parent=1 // pred_fallthru
      _
    // Predicated region
    $region10: #{tpu_custom_call.1} parent=1 // pred_check
      _
    $region11: #{tpu_custom_call.1} parent=1 // pred_check_branch
      %24 = sbr.rel (0) target = $region13
    $region12: #{tpu_custom_call.1} parent=1 // pred_region
      %25 = dma.done [#allocation3], 256
    $region13: #{tpu_custom_call.1} parent=1 // pred_fallthru
      _
    %v26 = vld [vmem:[#allocation2] sm:$0xff]
    %v27 = vld [vmem:[#allocation2 + $0x8] sm:$0xff]
    %v28 = vld [vmem:[%s1] sm:$0x1]
    %v30 = vlaneseq
    %v31 = vshrl.u32 %v30, 7
    %v32 = vsub.s32 0, %v31
    %v33 = vrot.slane %v28, %v32
    %v35 = vmul.f32 %v26, %v33
    %v36 = vmul.f32 %v27, %v33
    %vm37 = vcmask 261120
    %v38 = vsel %vm37, %v35, 0.0
    %39 = vadd.xlane.f32.xlu0 %v38
    %v40 = vpop.xlane.xlu0 %39
    %v41 = vsel %vm37, %v36, 0.0
    %42 = vadd.xlane.f32.xlu0 %v41
    %v43 = vpop.xlane.xlu0 %42
    %v46 = vlaneseq
    %v47 = vand.u32 %v46, 127
    %v48 = vlaneseq
    %v49 = vshrl.u32 %v48, 7
    %v50 = vsub.s32 %v47, %v49
    %v51 = vrot.slane %v40, %v50
    %v52 = vlaneseq
    %v53 = vshrl.u32 %v52, 7
    %v54 = vsub.s32 %v47, %v53
    %v55 = vrot.slane %v43, %v54
    %vm56 = vcmask 1041409
    %v57 = vsel %vm56, %v55, %v51
    %vm59 = vcmask 58368
    %v60 = vsel %vm59, %v57, -inf
    %61 = vmax.xlane.f32.xlu0 %v60
    %v62 = vpop.xlane.xlu0 %61
    %v64 = vlaneseq
    %v65 = vshrl.u32 %v64, 7
    %v66 = vsub.s32 0, %v65
    %v67 = vrot.slane %v62, %v66
    %v68 = vlaneseq
    %v69 = vshrl.u32 %v68, 7
    %v70 = vsub.s32 1, %v69
    %v71 = vrot.slane %v62, %v70
    %v74 = vsub.f32 %v40, %v67
    %v75 = vsub.f32 %v43, %v71
    %v76 = vmul.f32 %v74, 1.442695
    %v77 = vpow.pop %v76
    %v78 = vmul.f32 %v75, 1.442695
    %v79 = vpow.pop %v78
    %82 = vset.pattern.permute.xlu0 0
    %83 = vperm.xlu0 %82, %v77
    %v84 = vpop.permute.xlu0 %83
    %85 = vset.pattern.permute.xlu0 0
    %86 = vperm.xlu0 %85, %v79
    %v87 = vpop.permute.xlu0 %86
    %v88 = vlaneseq
    %v89 = vshrl.u32 %v88, 7
    %v90 = vsub.s32 %v47, %v89
    %v91 = vrot.slane %v84, %v90
    %v92 = vlaneseq
    %v93 = vshrl.u32 %v92, 7
    %v94 = vsub.s32 %v47, %v93
    %v95 = vrot.slane %v87, %v94
    %v96 = vsel %vm56, %v95, %v91
    %v98 = vsel %vm59, %v96, 0.0
    %99 = vadd.xlane.f32.xlu0 %v98
    %v100 = vpop.xlane.xlu0 %99
    %v102 = vlaneseq
    %v103 = vshrl.u32 %v102, 7
    %v104 = vsub.s32 0, %v103
    %v105 = vrot.slane %v100, %v104
    %v106 = vlaneseq
    %v107 = vshrl.u32 %v106, 7
    %v108 = vsub.s32 1, %v107
    %v109 = vrot.slane %v100, %v108
    %v112 = vrcp.pop %v105
    %v113 = vmul.f32 %v77, %v112
    %v114 = vrcp.pop %v109
    %v115 = vmul.f32 %v79, %v114
    %117 = vset.pattern.permute.xlu0 0
    %118 = vperm.xlu0 %117, %v113
    %v119 = vpop.permute.xlu0 %118
    %122 = vset.pattern.permute.xlu0 0
    %123 = vperm.xlu0 %122, %v115
    %v124 = vpop.permute.xlu0 %123
    %v126 = vmul.f32 %v26, %v119
    %v127 = vmul.f32 %v27, %v124
    %v128 = vsel %vm37, %v126, 0.0
    %v129 = vrot.slane %v128, 4
    %v130 = vadd.f32 %v128, %v129
    %v131 = vrot.slane %v130, 2
    %v132 = vadd.f32 %v130, %v131
    %v133 = vrot.slane %v132, 1
    %v134 = vadd.f32 %v132, %v133
    %v135 = vsel %vm37, %v127, 0.0
    %v136 = vrot.slane %v135, 4
    %v137 = vadd.f32 %v135, %v136
    %v138 = vrot.slane %v137, 2
    %v139 = vadd.f32 %v137, %v138
    %v140 = vrot.slane %v139, 1
    %v141 = vadd.f32 %v139, %v140
    %v144 = vsel %vm56, %v141, %v134
    %vm146 = vcmask 254976
    %147 = vst.msk [vmem:[#allocation5] sm:$0x3] %vm146, %v144
    // Predicated region
    $region14: #{tpu_custom_call.1} parent=1 // pred_check
      _
    $region15: #{tpu_custom_call.1} parent=1 // pred_check_branch
      %149 = sbr.rel (0) target = $region17
    $region16: #{tpu_custom_call.1} parent=1 // pred_region
      %s151 = ssub.s32 32, 32
      %152 = vsyncadd [#allocation4], %s151
      %s154 = sshll.u32 [#allocation5], 4
      %s155 = int_to_ptr.vmem [resolvable:$true] %s154
      %157 = dma.vmem_to_hbm [thread:$0]  %s155, 32, %s2, [#allocation4]
    $region17: #{tpu_custom_call.1} parent=1 // pred_fallthru
      _
    // Predicated region
    $region18: #{tpu_custom_call.1} parent=1 // pred_check
      _
    $region19: #{tpu_custom_call.1} parent=1 // pred_check_branch
      %159 = sbr.rel (0) target = $region21
    $region20: #{tpu_custom_call.1} parent=1 // pred_region
      %160 = dma.done [#allocation4], 32
    $region21: #{tpu_custom_call.1} parent=1 // pred_fallthru
      _
    %161 = vsyncpa [#allocation3], 1
    %162 = vsyncpa [#allocation4], 1

</llo_original>
